<compile_context>
chip_gen: v7x
topology: tpu7x:2x2x1
jax: 0.10.0
libtpu: 0.0.40
codegen_flags: <defaults>
</compile_context>

<pallas_src>
import jax
import jax.numpy as jnp
from jax.experimental import pallas as pl
from jax.experimental.pallas import tpu as pltpu


def _round_up(n, m):
    return ((n + m - 1) // m) * m


def _make_kernel(d_in, activation):
    """Build the fused kernel for a given input width / activation (static)."""
    r1 = _round_up(d_in, 8)   # rows [0, d_in)   : w1^T  (padded block to r1)
    r2 = r1 + 128             # rows [r1, r2)    : w2^T  (zero-padded 128x128)
    r3 = r2 + 128             # rows [r2, r3)    : w3^T  (zero-padded 128x128)
    rb = r3                   # rows [r3, r3+8)  : b1 / b2 / b3 / w4 / b4 pack

    if activation == "relu":
        act = lambda v: jnp.maximum(v, 0.0)
    elif activation == "leaky_relu":
        act = lambda v: jnp.where(v > 0, v, 0.01 * v)
    elif activation == "elu":
        act = lambda v: jnp.where(v > 0, v, jnp.exp(v) - 1.0)
    elif activation == "tanh":
        act = jnp.tanh
    else:
        raise ValueError("activation must be relu / leaky_relu / elu / tanh")
    # Note: act(0) == 0 for all four, so the zero-padded lanes stay zero
    # through every layer and never contaminate the final reduction.

    def kernel(x_ref, w_ref, o_ref):
        # x_ref : [tile_b, d_in] f32   (natural layout, batch on sublanes)
        # w_ref : [rows, 128]    f32   (single resident weight/bias slab)
        # o_ref : [tile_b, 1]    f32
        xb = x_ref[...].astype(jnp.bfloat16)
        w = w_ref[...]

        # fc1 -> bn1 (folded) -> act      (dropout = identity in eval mode)
        a = jnp.dot(xb, w[0:d_in, :].astype(jnp.bfloat16),
                    preferred_element_type=jnp.float32)
        a = act(a + w[rb + 0:rb + 1, :]).astype(jnp.bfloat16)

        # fc2 -> bn2 -> act
        a = jnp.dot(a, w[r1:r2, :].astype(jnp.bfloat16),
                    preferred_element_type=jnp.float32)
        a = act(a + w[rb + 1:rb + 2, :]).astype(jnp.bfloat16)

        # fc3 -> bn3 -> act   (stay f32 for the cheap VPU/XLU finish)
        a = jnp.dot(a, w[r2:r3, :].astype(jnp.bfloat16),
                    preferred_element_type=jnp.float32)
        a = act(a + w[rb + 2:rb + 3, :])

        # fc4: N=1 / K=16 would waste a full MXU pass -> VPU multiply + lane
        # reduce.  Zero-padded lanes contribute 0.
        out = jnp.sum(a * w[rb + 3:rb + 4, :], axis=1, keepdims=True)
        o_ref[...] = out + w[rb + 4:rb + 5, 0:1]

    return kernel


def prepare_params(params, *, eps=1e-5):
    """Fold BatchNorm into the Linears and pack everything into a single
    lane-dense f32 slab.  Call ONCE per parameter set (hoisted out of the
    per-inference path, per the perf review)."""
    def fold(fc, bn):
        # bn(fc(x)) = s*(W x + b) + t = (s . W) x + (s*b + t)
        inv_std = 1.0 / jnp.sqrt(bn["running_var"] + eps)
        s = bn["gamma"] * inv_std
        t = bn["beta"] - bn["running_mean"] * s
        return fc["w"] * s[:, None], fc["b"] * s + t

    w1, b1 = fold(params["fc1"], params["bn1"])
    w2, b2 = fold(params["fc2"], params["bn2"])
    w3, b3 = fold(params["fc3"], params["bn3"])
    w4 = params["fc4"]["w"].reshape(-1)
    b4 = params["fc4"]["b"].reshape(())

    h1, d_in = w1.shape
    h2, h3 = w2.shape[0], w3.shape[0]
    if max(d_in, h1, h2, h3) > 128:
        raise NotImplementedError("dims > 128 not supported by this kernel")

    r1 = _round_up(d_in, 8)
    r2 = r1 + 128
    r3 = r2 + 128
    rows = r3 + 8

    slab = jnp.zeros((rows, 128), jnp.float32)
    slab = slab.at[0:d_in, 0:h1].set(w1.T)          # w1^T
    slab = slab.at[r1:r1 + h1, 0:h2].set(w2.T)      # w2^T (rest zero)
    slab = slab.at[r2:r2 + h2, 0:h3].set(w3.T)      # w3^T (rest zero)
    slab = slab.at[r3 + 0, 0:h1].set(b1)            # folded biases
    slab = slab.at[r3 + 1, 0:h2].set(b2)
    slab = slab.at[r3 + 2, 0:h3].set(b3)
    slab = slab.at[r3 + 3, 0:h3].set(w4)            # fc4 weight row
    slab = slab.at[r3 + 4, 0].set(b4)               # fc4 bias
    return slab, (d_in, h1, h2, h3)


def diabetes_nn_forward(x, prepared, *, activation="relu", max_tile_b=2048):
    """Eval-mode forward of DiabetesNN via a single fused Pallas call."""
    slab, (d_in, h1, h2, h3) = prepared
    B, xf = x.shape
    assert xf == d_in, (xf, d_in)

    # Batch tiling: one full-extent block for small B; otherwise a large tile,
    # capped so big batches always produce >= 2 grid steps (keeps both v7x
    # TensorCores busy).  Per-tile VMEM ~ tile_b * ~4.5 KB -> 2048 fits every
    # generation; sweep 4096-8192 with a higher vmem limit if desired.
    if B <= 256:
        tile_b = B
    else:
        tile_b = min(max_tile_b, _round_up(pl.cdiv(B, 2), 8))
    grid = pl.cdiv(B, tile_b)

    flops = 2 * B * (d_in * h1 + h1 * h2 + h2 * h3 + h3)
    transc = B * (h1 + h2 + h3) if activation in ("elu", "tanh") else 0
    bytes_accessed = (x.size * x.dtype.itemsize + B * 4
                      + slab.size * slab.dtype.itemsize)

    kernel = _make_kernel(d_in, activation)
    return pl.pallas_call(
        kernel,
        out_shape=jax.ShapeDtypeStruct((B, 1), jnp.float32),
        grid=(grid,),
        in_specs=[
            pl.BlockSpec((tile_b, d_in), lambda i: (i, 0)),   # batch tile of x
            pl.BlockSpec(slab.shape, lambda i: (0, 0)),       # resident slab
        ],
        out_specs=pl.BlockSpec((tile_b, 1), lambda i: (i, 0)),
        compiler_params=pltpu.CompilerParams(
            dimension_semantics=("parallel",),                # 2 TCs on v7x
            vmem_limit_bytes=32 * 1024 * 1024),               # headroom on v5e
        cost_estimate=pl.CostEstimate(
            flops=flops, transcendentals=transc,
            bytes_accessed=bytes_accessed),
    )(x, slab)


def init_params(key, input_dim, hidden_dims=(64, 32, 16)):
    """Deterministic init matching the module's shapes (synthetic, not a checkpoint)."""
    dims = [input_dim, *hidden_dims, 1]
    params = {}
    keys = jax.random.split(key, 8)
    for li in range(4):
        fan_in, fan_out = dims[li], dims[li + 1]
        bound = 1.0 / jnp.sqrt(jnp.asarray(fan_in, jnp.float32))
        w = jax.random.uniform(keys[2 * li], (fan_out, fan_in),
                               minval=-bound, maxval=bound, dtype=jnp.float32)
        b = jax.random.uniform(keys[2 * li + 1], (fan_out,),
                               minval=-bound, maxval=bound, dtype=jnp.float32)
        params[f"fc{li + 1}"] = {"w": w, "b": b}

    # Non-trivial BN running stats / affine so the BN path is exercised.
    bn_key = jax.random.PRNGKey(1)
    for bi, h in enumerate(hidden_dims, start=1):
        k1, k2, k3, k4, bn_key = jax.random.split(bn_key, 5)
        params[f"bn{bi}"] = {
            "gamma": 1.0 + 0.1 * jax.random.normal(k1, (h,), jnp.float32),
            "beta": 0.1 * jax.random.normal(k2, (h,), jnp.float32),
            "running_mean": 0.1 * jax.random.normal(k3, (h,), jnp.float32),
            "running_var": 1.0 + 0.1 * jax.random.uniform(k4, (h,), jnp.float32),
        }
    return params


def reference_forward(x, params, activation="relu"):
    """Pure-JAX f32 reference (eval mode) for correctness checking."""
    eps = 1e-5
    if activation == "relu":
        act = lambda v: jnp.maximum(v, 0.0)
    elif activation == "leaky_relu":
        act = lambda v: jnp.where(v > 0, v, 0.01 * v)
    elif activation == "elu":
        act = lambda v: jnp.where(v > 0, v, jnp.exp(v) - 1.0)
    else:
        act = jnp.tanh
    h = x
    for li in range(1, 4):
        fc = params[f"fc{li}"]
        bn = params[f"bn{li}"]
        h = h @ fc["w"].T + fc["b"]
        h = (h - bn["running_mean"]) / jnp.sqrt(bn["running_var"] + eps)
        h = h * bn["gamma"] + bn["beta"]
        h = act(h)
    fc = params["fc4"]
    return h @ fc["w"].T + fc["b"]


if __name__ == "__main__":
    key = jax.random.PRNGKey(0)
    k_x, k_p = jax.random.split(key)

    batch, input_dim = 8, 8
    hidden_dims = (64, 32, 16)

    x = jax.random.normal(k_x, (batch, input_dim), dtype=jnp.float32)
    params = init_params(k_p, input_dim, hidden_dims)

    prepared = prepare_params(params)          # one-time prep (hoisted)
    out = diabetes_nn_forward(x, prepared)     # single fused pallas_call
    out = jax.block_until_ready(out)

    ref = reference_forward(x, params)
    assert out.shape == (batch, 1), out.shape
    # bf16 matmuls -> looser tolerance than the pure-f32 reference path.
    assert jnp.allclose(out, ref, atol=5e-2, rtol=5e-2), (
        f"mismatch vs reference, max abs diff = {jnp.max(jnp.abs(out - ref))}")

    print("KERNEL_OK")
</pallas_src>

<mosaic_0001>
module attributes {stable_mosaic.version = 11 : i64} {
  func.func @kernel(%arg0: i32, %arg1: memref<8x8xf32, #tpu.memory_space<vmem>>, %arg2: memref<272x128xf32, #tpu.memory_space<vmem>>, %arg3: memref<8x1xf32, #tpu.memory_space<vmem>>) attributes {dimension_semantics = [#tpu.dimension_semantics<parallel>], iteration_bounds = array<i64: 1>, scalar_prefetch = 0 : i64, scratch_operands = 0 : i64, tpu.core_type = #tpu.core_type<tc>, window_params = [{transform_indices = @transform_0, window_bounds = array<i64: 8, 8>}, {pipeline_mode = #tpu.pipeline_mode<synchronous>, transform_indices = @transform_1, window_bounds = array<i64: 272, 128>}, {transform_indices = @transform_2, window_bounds = array<i64: 8, 1>}]} {
    %c0 = arith.constant 0 : index
    %c0_0 = arith.constant 0 : index
    %0 = vector.load %arg1[%c0, %c0_0] : memref<8x8xf32, #tpu.memory_space<vmem>>, vector<8x8xf32>
    %1 = arith.truncf %0 : vector<8x8xf32> to vector<8x8xbf16>
    %c0_1 = arith.constant 0 : index
    %c0_2 = arith.constant 0 : index
    %2 = vector.load %arg2[%c0_1, %c0_2] : memref<272x128xf32, #tpu.memory_space<vmem>>, vector<272x128xf32>
    %3 = vector.extract_strided_slice %2 {offsets = [0, 0], sizes = [8, 128], strides = [1, 1]} : vector<272x128xf32> to vector<8x128xf32>
    %4 = arith.truncf %3 : vector<8x128xf32> to vector<8x128xbf16>
    %cst = arith.constant dense<0.000000e+00> : vector<8x128xf32>
    %5 = tpu.matmul %1, %4, %cst {dimension_numbers = #tpu.dot_dimension_numbers<[1], [0], [0], [1], [0, 0, 1, 1], [], []>} : vector<8x8xbf16>, vector<8x128xbf16>, vector<8x128xf32> -> vector<8x128xf32>
    %6 = vector.extract_strided_slice %2 {offsets = [264, 0], sizes = [1, 128], strides = [1, 1]} : vector<272x128xf32> to vector<1x128xf32>
    %7 = vector.broadcast %6 : vector<1x128xf32> to vector<8x128xf32>
    %8 = arith.addf %5, %7 : vector<8x128xf32>
    %cst_3 = arith.constant 0.000000e+00 : f32
    %9 = vector.broadcast %cst_3 : f32 to vector<8x128xf32>
    %10 = arith.maximumf %8, %9 : vector<8x128xf32>
    %11 = arith.truncf %10 : vector<8x128xf32> to vector<8x128xbf16>
    %12 = vector.extract_strided_slice %2 {offsets = [8, 0], sizes = [128, 128], strides = [1, 1]} : vector<272x128xf32> to vector<128x128xf32>
    %13 = arith.truncf %12 : vector<128x128xf32> to vector<128x128xbf16>
    %cst_4 = arith.constant dense<0.000000e+00> : vector<8x128xf32>
    %14 = tpu.matmul %11, %13, %cst_4 {dimension_numbers = #tpu.dot_dimension_numbers<[1], [0], [0], [1], [0, 0, 1, 1], [], []>} : vector<8x128xbf16>, vector<128x128xbf16>, vector<8x128xf32> -> vector<8x128xf32>
    %15 = vector.extract_strided_slice %2 {offsets = [265, 0], sizes = [1, 128], strides = [1, 1]} : vector<272x128xf32> to vector<1x128xf32>
    %16 = vector.broadcast %15 : vector<1x128xf32> to vector<8x128xf32>
    %17 = arith.addf %14, %16 : vector<8x128xf32>
    %cst_5 = arith.constant 0.000000e+00 : f32
    %18 = vector.broadcast %cst_5 : f32 to vector<8x128xf32>
    %19 = arith.maximumf %17, %18 : vector<8x128xf32>
    %20 = arith.truncf %19 : vector<8x128xf32> to vector<8x128xbf16>
    %21 = vector.extract_strided_slice %2 {offsets = [136, 0], sizes = [128, 128], strides = [1, 1]} : vector<272x128xf32> to vector<128x128xf32>
    %22 = arith.truncf %21 : vector<128x128xf32> to vector<128x128xbf16>
    %cst_6 = arith.constant dense<0.000000e+00> : vector<8x128xf32>
    %23 = tpu.matmul %20, %22, %cst_6 {dimension_numbers = #tpu.dot_dimension_numbers<[1], [0], [0], [1], [0, 0, 1, 1], [], []>} : vector<8x128xbf16>, vector<128x128xbf16>, vector<8x128xf32> -> vector<8x128xf32>
    %24 = vector.extract_strided_slice %2 {offsets = [266, 0], sizes = [1, 128], strides = [1, 1]} : vector<272x128xf32> to vector<1x128xf32>
    %25 = vector.broadcast %24 : vector<1x128xf32> to vector<8x128xf32>
    %26 = arith.addf %23, %25 : vector<8x128xf32>
    %cst_7 = arith.constant 0.000000e+00 : f32
    %27 = vector.broadcast %cst_7 : f32 to vector<8x128xf32>
    %28 = arith.maximumf %26, %27 : vector<8x128xf32>
    %29 = vector.extract_strided_slice %2 {offsets = [267, 0], sizes = [1, 128], strides = [1, 1]} : vector<272x128xf32> to vector<1x128xf32>
    %30 = vector.broadcast %29 : vector<1x128xf32> to vector<8x128xf32>
    %31 = arith.mulf %28, %30 : vector<8x128xf32>
    %cst_8 = arith.constant dense<0.000000e+00> : vector<8xf32>
    %32 = vector.multi_reduction <add>, %31, %cst_8 [1] : vector<8x128xf32> to vector<8xf32>
    %33 = vector.shape_cast %32 : vector<8xf32> to vector<8x1xf32>
    %34 = vector.extract_strided_slice %2 {offsets = [268, 0], sizes = [1, 1], strides = [1, 1]} : vector<272x128xf32> to vector<1x1xf32>
    %35 = vector.broadcast %34 : vector<1x1xf32> to vector<8x1xf32>
    %36 = arith.addf %33, %35 : vector<8x1xf32>
    %c0_9 = arith.constant 0 : index
    %c0_10 = arith.constant 0 : index
    %37 = vector.load %arg3[%c0_9, %c0_10] : memref<8x1xf32, #tpu.memory_space<vmem>>, vector<8x1xf32>
    tpu.vector_store %arg3[%c0_9, %c0_10], %36 {strides = array<i32>} : memref<8x1xf32, #tpu.memory_space<vmem>>, vector<8x1xf32>,
    return
  }
  func.func @transform_0(%arg0: i32) -> (i32, i32) {
    %c0_i32 = arith.constant 0 : i32
    %c0_i32_0 = arith.constant 0 : i32
    return %arg0, %c0_i32 : i32, i32
  }
  func.func @transform_1(%arg0: i32) -> (i32, i32) {
    %c0_i32 = arith.constant 0 : i32
    %c0_i32_0 = arith.constant 0 : i32
    %c0_i32_1 = arith.constant 0 : i32
    return %c0_i32, %c0_i32_0 : i32, i32
  }
  func.func @transform_2(%arg0: i32) -> (i32, i32) {
    %c0_i32 = arith.constant 0 : i32
    %c0_i32_0 = arith.constant 0 : i32
    return %arg0, %c0_i32 : i32, i32
  }
}

</mosaic_0001>

<llo_original>
// kernel: tpu_custom_call.1
$region0: #{tpu_custom_call.1}
  #allocation0 [shape = 'u32[]', space=smem, size = 0x4, offset = 0x4, fixed_abs, tag = 'smem constant byte address 0x4 - core index']
  #allocation1 [shape = 'u32[144,128]{1,0:T(1,128)}', space=vmem, size = 0x12000, scoped, tag = 'internal scratch']
  %s0 = inlined_call_operand.hbm [shape: f32[8,8], index: 0, kind: input, shape index: {}]
  %s1 = inlined_call_operand.hbm [shape: f32[272,128], index: 1, kind: input, shape index: {}]
  %s2 = inlined_call_operand.vmem [shape: f32[8,1], index: 2, kind: output, shape index: {}]
  %s3 = sld [smem:[#allocation0]]
  $region26: #{tpu_custom_call.1} parent=0
    _
  %s5 = ssub.s32 1, %s3
  %s6 = scalar_select 0, %s5, %s3
  $region1: #{tpu_custom_call.1} parent=0
    #allocation2 [shape = 'u8[4096]{0}', space=vmem, size = 0x1000, scoped, tag = 'input window, operand 0, single buffered']
    #allocation3 [shape = 's32[1]{0}', space=sflag, size = 0x4, scoped, tag = 'scoped memory for tpu_custom_call.1']
    #allocation4 [shape = 'u8[139264]{0}', space=vmem, size = 0x22000, scoped, tag = 'input window, operand 1, single buffered']
    #allocation5 [shape = 's32[1]{0}', space=sflag, size = 0x4, scoped, tag = 'scoped memory for tpu_custom_call.1']
    %7 = vsyncpa [#allocation3], 0
    %8 = vsyncpa [#allocation5], 0
    // Predicated region
    $region2: #{tpu_custom_call.1} parent=1 // pred_check
      _
    $region3: #{tpu_custom_call.1} parent=1 // pred_check_branch
      %10 = sbr.rel (0) target = $region5
    $region4: #{tpu_custom_call.1} parent=1 // pred_region
      %s12 = ssub.s32 128, 128
      %13 = vsyncadd [#allocation3], %s12
      %s15 = sshll.u32 [#allocation2], 4
      %s16 = int_to_ptr.vmem [resolvable:$true] %s15
      %18 = dma.hbm_to_vmem [thread:$0]  %s0, 128, %s16, [#allocation3]
    $region5: #{tpu_custom_call.1} parent=1 // pred_fallthru
      _
    // Predicated region
    $region6: #{tpu_custom_call.1} parent=1 // pred_check
      _
    $region7: #{tpu_custom_call.1} parent=1 // pred_check_branch
      %20 = sbr.rel (0) target = $region9
    $region8: #{tpu_custom_call.1} parent=1 // pred_region
      %s22 = ssub.s32 4352, 4352
      %23 = vsyncadd [#allocation5], %s22
      %s24 = sshll.u32 [#allocation4], 4
      %s25 = int_to_ptr.vmem [resolvable:$true] %s24
      %30 = dma.hbm_to_vmem [thread:$0]  %s1, 4352, %s25, [#allocation5], 128, 128, 8
    $region9: #{tpu_custom_call.1} parent=1 // pred_fallthru
      _
    // Predicated region
    $region10: #{tpu_custom_call.1} parent=1 // pred_check
      _
    $region11: #{tpu_custom_call.1} parent=1 // pred_check_branch
      %32 = sbr.rel (0) target = $region13
    $region12: #{tpu_custom_call.1} parent=1 // pred_region
      %33 = dma.done [#allocation3], 128
    $region13: #{tpu_custom_call.1} parent=1 // pred_fallthru
      _
    // Predicated region
    $region14: #{tpu_custom_call.1} parent=1 // pred_check
      _
    $region15: #{tpu_custom_call.1} parent=1 // pred_check_branch
      %35 = sbr.rel (0) target = $region17
    $region16: #{tpu_custom_call.1} parent=1 // pred_region
      %36 = dma.done [#allocation5], 4352
    $region17: #{tpu_custom_call.1} parent=1 // pred_fallthru
      _
    %v38 = vld [vmem:[#allocation2] sm:$0xff]
    %v39 = vpack.c.bf16 %v38, %v38
    %v40 = vld [vmem:[#allocation4] sm:$0xff]
    %v41 = vld [vmem:[#allocation4 + $0x8] sm:$0xff]
    %v42 = vld [vmem:[#allocation4 + $0x10] sm:$0xff]
    %v43 = vld [vmem:[#allocation4 + $0x18] sm:$0xff]
    %v44 = vld [vmem:[#allocation4 + $0x20] sm:$0xff]
    %v45 = vld [vmem:[#allocation4 + $0x28] sm:$0xff]
    %v46 = vld [vmem:[#allocation4 + $0x30] sm:$0xff]
    %v47 = vld [vmem:[#allocation4 + $0x38] sm:$0xff]
    %v48 = vld [vmem:[#allocation4 + $0x40] sm:$0xff]
    %v49 = vld [vmem:[#allocation4 + $0x48] sm:$0xff]
    %v50 = vld [vmem:[#allocation4 + $0x50] sm:$0xff]
    %v51 = vld [vmem:[#allocation4 + $0x58] sm:$0xff]
    %v52 = vld [vmem:[#allocation4 + $0x60] sm:$0xff]
    %v53 = vld [vmem:[#allocation4 + $0x68] sm:$0xff]
    %v54 = vld [vmem:[#allocation4 + $0x70] sm:$0xff]
    %v55 = vld [vmem:[#allocation4 + $0x78] sm:$0xff]
    %v56 = vld [vmem:[#allocation4 + $0x80] sm:$0xff]
    %v57 = vld [vmem:[#allocation4 + $0x88] sm:$0xff]
    %v58 = vld [vmem:[#allocation4 + $0x90] sm:$0xff]
    %v59 = vld [vmem:[#allocation4 + $0x98] sm:$0xff]
    %v60 = vld [vmem:[#allocation4 + $0xa0] sm:$0xff]
    %v61 = vld [vmem:[#allocation4 + $0xa8] sm:$0xff]
    %v62 = vld [vmem:[#allocation4 + $0xb0] sm:$0xff]
    %v63 = vld [vmem:[#allocation4 + $0xb8] sm:$0xff]
    %v64 = vld [vmem:[#allocation4 + $0xc0] sm:$0xff]
    %v65 = vld [vmem:[#allocation4 + $0xc8] sm:$0xff]
    %v66 = vld [vmem:[#allocation4 + $0xd0] sm:$0xff]
    %v67 = vld [vmem:[#allocation4 + $0xd8] sm:$0xff]
    %v68 = vld [vmem:[#allocation4 + $0xe0] sm:$0xff]
    %v69 = vld [vmem:[#allocation4 + $0xe8] sm:$0xff]
    %v70 = vld [vmem:[#allocation4 + $0xf0] sm:$0xff]
    %v71 = vld [vmem:[#allocation4 + $0xf8] sm:$0xff]
    %v72 = vld [vmem:[#allocation4 + $0x100] sm:$0xff]
    %v73 = vld [vmem:[#allocation4 + $0x108] sm:$0xff]
    %v74 = vpack.c.bf16 %v40, %v40
    %v75 = vlaneseq
    %v76 = vshrl.u32 %v75, 7
    %v77 = vsub.s32 0, %v76
    %v78 = vrot.slane %v73, %v77
    %vm79 = vcmask 64512
    %v81 = vsel %vm79, %v39, 0
    %vm83 = vcmask 1043456
    %v85 = vsel %vm83, %v74, 0
    %87 = vmatprep.subr.bf16.mxu0 0
    %88 = vmatpush1.bf16.msra.mxu0 %v85
    %89 = vmatprep.subr.bf16.mxu0 0
    %90 = vmatpush1.bf16.msra.mxu0 0
    %91 = vmatprep.subr.bf16.mxu0 0
    %92 = vmatpush1.bf16.msra.mxu0 0
    %93 = vmatprep.subr.bf16.mxu0 0
    %94 = vmatpush1.bf16.msra.mxu0 0
    %95 = vmatprep.subr.bf16.mxu0 0
    %96 = vmatpush1.bf16.msra.mxu0 0
    %97 = vmatprep.subr.bf16.mxu0 0
    %98 = vmatpush1.bf16.msra.mxu0 0
    %99 = vmatprep.subr.bf16.mxu0 0
    %100 = vmatpush1.bf16.msra.mxu0 0
    %101 = vmatprep.subr.bf16.mxu0 0
    %102 = vmatpush1.bf16.msra.mxu0 0
    %103 = vmatprep.subr.bf16.mxu0 0
    %104 = vmatpush1.bf16.msra.mxu0 0
    %105 = vmatprep.subr.bf16.mxu0 0
    %106 = vmatpush1.bf16.msra.mxu0 0
    %107 = vmatprep.subr.bf16.mxu0 0
    %108 = vmatpush1.bf16.msra.mxu0 0
    %109 = vmatprep.subr.bf16.mxu0 0
    %110 = vmatpush1.bf16.msra.mxu0 0
    %111 = vmatprep.subr.bf16.mxu0 0
    %112 = vmatpush1.bf16.msra.mxu0 0
    %113 = vmatprep.subr.bf16.mxu0 0
    %114 = vmatpush1.bf16.msra.mxu0 0
    %115 = vmatprep.subr.bf16.mxu0 0
    %116 = vmatpush1.bf16.msra.mxu0 0
    %117 = vmatprep.subr.bf16.mxu0 0
    %118 = vmatpush1.bf16.msra.mxu0 0
    %119 = vmatprep.mubr.bf16.mxu0 0
    %120 = vmatmul.mubr.bf16.gmra.mrb[0].mxu0 %v81
    %v121 = vpop.f32.mrb[0].mxu0
    %v122 = vadd.f32 %v78, %v121
    %v123 = vpop.f32.mrb[0].mxu0
    %v124 = vpop.f32.mrb[0].mxu0
    %v125 = vpop.f32.mrb[0].mxu0
    %126 = vdwg.mxu0
    %v127 = vmax.f32 %v122, 0.0
    %v128 = vpack.c.bf16 %v127, %v127
    %v129 = vpack.c.bf16 %v42, %v41
    %v130 = vpack.c.bf16 %v44, %v43
    %v131 = vpack.c.bf16 %v46, %v45
    %v132 = vpack.c.bf16 %v48, %v47
    %v133 = vpack.c.bf16 %v50, %v49
    %v134 = vpack.c.bf16 %v52, %v51
    %v135 = vpack.c.bf16 %v54, %v53
    %v136 = vpack.c.bf16 %v56, %v55
    %v137 = vlaneseq
    %v138 = vshrl.u32 %v137, 7
    %v139 = vsub.s32 1, %v138
    %v140 = vrot.slane %v73, %v139
    %141 = vmatprep.subr.bf16.mxu0 0
    %142 = vmatpush1.bf16.msra.mxu0 %v129
    %143 = vmatprep.subr.bf16.mxu0 0
    %144 = vmatpush1.bf16.msra.mxu0 %v130
    %145 = vmatprep.subr.bf16.mxu0 0
    %146 = vmatpush1.bf16.msra.mxu0 %v131
    %147 = vmatprep.subr.bf16.mxu0 0
    %148 = vmatpush1.bf16.msra.mxu0 %v132
    %149 = vmatprep.subr.bf16.mxu0 0
    %150 = vmatpush1.bf16.msra.mxu0 %v133
    %151 = vmatprep.subr.bf16.mxu0 0
    %152 = vmatpush1.bf16.msra.mxu0 %v134
    %153 = vmatprep.subr.bf16.mxu0 0
    %154 = vmatpush1.bf16.msra.mxu0 %v135
    %155 = vmatprep.subr.bf16.mxu0 0
    %156 = vmatpush1.bf16.msra.mxu0 %v136
    %157 = vmatprep.subr.bf16.mxu0 0
    %158 = vmatpush1.bf16.msra.mxu0 0
    %159 = vmatprep.subr.bf16.mxu0 0
    %160 = vmatpush1.bf16.msra.mxu0 0
    %161 = vmatprep.subr.bf16.mxu0 0
    %162 = vmatpush1.bf16.msra.mxu0 0
    %163 = vmatprep.subr.bf16.mxu0 0
    %164 = vmatpush1.bf16.msra.mxu0 0
    %165 = vmatprep.subr.bf16.mxu0 0
    %166 = vmatpush1.bf16.msra.mxu0 0
    %167 = vmatprep.subr.bf16.mxu0 0
    %168 = vmatpush1.bf16.msra.mxu0 0
    %169 = vmatprep.subr.bf16.mxu0 0
    %170 = vmatpush1.bf16.msra.mxu0 0
    %171 = vmatprep.subr.bf16.mxu0 0
    %172 = vmatpush1.bf16.msra.mxu0 0
    %173 = vmatprep.mubr.bf16.mxu0 0
    %174 = vmatmul.mubr.bf16.gmra.mrb[0].mxu0 %v128
    %v175 = vpop.f32.mrb[0].mxu0
    %v176 = vadd.f32 %v140, %v175
    %v177 = vpop.f32.mrb[0].mxu0
    %v178 = vpop.f32.mrb[0].mxu0
    %v179 = vpop.f32.mrb[0].mxu0
    %180 = vdwg.mxu0
    %v181 = vmax.f32 %v176, 0.0
    %v182 = vpack.c.bf16 %v181, %v181
    %v183 = vpack.c.bf16 %v58, %v57
    %v184 = vpack.c.bf16 %v60, %v59
    %v185 = vpack.c.bf16 %v62, %v61
    %v186 = vpack.c.bf16 %v64, %v63
    %v187 = vpack.c.bf16 %v66, %v65
    %v188 = vpack.c.bf16 %v68, %v67
    %v189 = vpack.c.bf16 %v70, %v69
    %v190 = vpack.c.bf16 %v72, %v71
    %v191 = vlaneseq
    %v192 = vshrl.u32 %v191, 7
    %v193 = vsub.s32 2, %v192
    %v194 = vrot.slane %v73, %v193
    %195 = vmatprep.subr.bf16.mxu0 0
    %196 = vmatpush1.bf16.msra.mxu0 %v183
    %197 = vmatprep.subr.bf16.mxu0 0
    %198 = vmatpush1.bf16.msra.mxu0 %v184
    %199 = vmatprep.subr.bf16.mxu0 0
    %200 = vmatpush1.bf16.msra.mxu0 %v185
    %201 = vmatprep.subr.bf16.mxu0 0
    %202 = vmatpush1.bf16.msra.mxu0 %v186
    %203 = vmatprep.subr.bf16.mxu0 0
    %204 = vmatpush1.bf16.msra.mxu0 %v187
    %205 = vmatprep.subr.bf16.mxu0 0
    %206 = vmatpush1.bf16.msra.mxu0 %v188
    %207 = vmatprep.subr.bf16.mxu0 0
    %208 = vmatpush1.bf16.msra.mxu0 %v189
    %209 = vmatprep.subr.bf16.mxu0 0
    %210 = vmatpush1.bf16.msra.mxu0 %v190
    %211 = vmatprep.subr.bf16.mxu0 0
    %212 = vmatpush1.bf16.msra.mxu0 0
    %213 = vmatprep.subr.bf16.mxu0 0
    %214 = vmatpush1.bf16.msra.mxu0 0
    %215 = vmatprep.subr.bf16.mxu0 0
    %216 = vmatpush1.bf16.msra.mxu0 0
    %217 = vmatprep.subr.bf16.mxu0 0
    %218 = vmatpush1.bf16.msra.mxu0 0
    %219 = vmatprep.subr.bf16.mxu0 0
    %220 = vmatpush1.bf16.msra.mxu0 0
    %221 = vmatprep.subr.bf16.mxu0 0
    %222 = vmatpush1.bf16.msra.mxu0 0
    %223 = vmatprep.subr.bf16.mxu0 0
    %224 = vmatpush1.bf16.msra.mxu0 0
    %225 = vmatprep.subr.bf16.mxu0 0
    %226 = vmatpush1.bf16.msra.mxu0 0
    %227 = vmatprep.mubr.bf16.mxu0 0
    %228 = vmatmul.mubr.bf16.gmra.mrb[0].mxu0 %v182
    %v229 = vpop.f32.mrb[0].mxu0
    %v230 = vadd.f32 %v194, %v229
    %v231 = vpop.f32.mrb[0].mxu0
    %v232 = vpop.f32.mrb[0].mxu0
    %v233 = vpop.f32.mrb[0].mxu0
    %234 = vdwg.mxu0
    %v235 = vmax.f32 %v230, 0.0
    %v236 = vlaneseq
    %v237 = vshrl.u32 %v236, 7
    %v238 = vsub.s32 3, %v237
    %v239 = vrot.slane %v73, %v238
    %v240 = vmul.f32 %v235, %v239
    %241 = vadd.xlane.f32.xlu0 %v240
    %v242 = vpop.xlane.xlu0 %241
    %v243 = vlaneseq
    %v244 = vshrl.u32 %v243, 7
    %v245 = vsub.s32 4, %v244
    %v246 = vrot.slane %v73, %v245
    %v247 = vadd.f32 %v242, %v246
    %vm248 = vcmask 7168
    %249 = vst.msk [vmem:[%s2] sm:$0xff] %vm248, %v247
    // Predicated region
    $region18: #{tpu_custom_call.1} parent=1 // pred_check
      _
    $region19: #{tpu_custom_call.1} parent=1 // pred_check_branch
      %251 = sbr.rel (0) target = $region21
    $region20: #{tpu_custom_call.1} parent=1 // pred_region
      _
    $region21: #{tpu_custom_call.1} parent=1 // pred_fallthru
      _
    // Predicated region
    $region22: #{tpu_custom_call.1} parent=1 // pred_check
      _
    $region23: #{tpu_custom_call.1} parent=1 // pred_check_branch
      %253 = sbr.rel (0) target = $region25
    $region24: #{tpu_custom_call.1} parent=1 // pred_region
      _
    $region25: #{tpu_custom_call.1} parent=1 // pred_fallthru
      _
    %254 = vsyncpa [#allocation3], 1
    %255 = vsyncpa [#allocation5], 1

</llo_original>
